<compile_context>
chip_gen: v5e
topology: v5e:2x2
jax: 0.10.0
libtpu: 0.0.40
codegen_flags: <defaults>
</compile_context>

<pallas_src>
import functools

import jax
import jax.numpy as jnp
from jax.experimental import pallas as pl
from jax.experimental.pallas import tpu as pltpu


def _gce_kernel(logits_ref, tgt_ref, out_ref, *, q, weight_base):
    # Full f32 path: v5e has no bf16 VPU/EUP; bf16 inputs are upcast here.
    x = logits_ref[...].astype(jnp.float32)                     # [bn, C]

    # Targets arrive lane-dense as [1, bn]; one XLU transpose onto sublanes.
    t_col = jnp.transpose(tgt_ref[...])                         # [bn, 1] int32

    # Stable log-sum-exp.  (x - m) has a single consumer (exp) so it stays
    # fused into the exp+sum pass instead of materializing a [bn, C] buffer.
    m = jnp.max(x, axis=-1, keepdims=True)                      # [bn, 1]
    denom = jnp.sum(jnp.exp(x - m), axis=-1, keepdims=True)     # [bn, 1]

    # One-hot gather of the target logit straight from x.
    col = jax.lax.broadcasted_iota(jnp.int32, x.shape, 1)       # [bn, C]
    x_t = jnp.sum(jnp.where(col == t_col, x, 0.0),
                  axis=-1, keepdims=True)                       # [bn, 1]

    # cross_entropy(reduction='none') = logsumexp(x) - x[target]
    ce = jnp.log(denom) + m - x_t                               # [bn, 1]

    # Lane-dense epilogue: single XLU transpose, then VPU/EUP work on [1, bn].
    # log(Yg) = -ce  =>  loss_weight = Yg**q * q = q * exp(-q * ce).
    ce_row = jnp.transpose(ce)                                  # [1, bn]
    w_row = q * jnp.exp(-q * ce_row)                            # [1, bn]
    loss_row = ce_row * w_row + weight_base                     # [1, bn]
    out_ref[0] = jnp.concatenate([loss_row, w_row], axis=0)     # [2, bn]


def _vmem_capacity_bytes():
    try:
        return int(pltpu.get_tpu_info().vmem_capacity_bytes)
    except Exception:
        return 64 * 1024 * 1024  # conservative: v7x per-TensorCore VMEM


def _vmem_limit_bytes():
    cap = _vmem_capacity_bytes()
    # 64 MiB on 128-MiB parts (v5e/v6e), 32 MiB on v7x's 64-MiB-per-TC.
    return int(min(max(cap // 2, 32 * 1024 * 1024), 64 * 1024 * 1024))


def _pick_block_n(n, c, itemsize):
    """Row-tile: biggest tile within a per-generation VMEM budget, lane (128)
    granularity when the budget allows, >=2 blocks when the batch allows so
    the 'parallel' grid axis can shard across v7x's two TensorCores."""
    cap = _vmem_capacity_bytes()
    tile_budget = max(1, cap // 16)                # ~8 MiB v5e/v6e, ~4 MiB v7x
    bytes_per_row = c * max(4, itemsize)           # f32 working copy dominates
    bn = max(1, tile_budget // bytes_per_row)
    bn = min(bn, 4096)                             # diminishing returns past a few MiB
    gran = 128 if bn >= 128 else 8                 # relax floor for huge C
    bn = max(gran, (bn // gran) * gran)
    if n >= 2 * gran:                              # keep >=2 blocks when possible
        bn = min(bn, max(gran, (pl.cdiv(n, 2) // gran) * gran))
    if bn >= n:
        bn = n                                     # single full-dims block
    return bn


def _gce_call(logits, tgt2d, *, q, weight_base):
    """One pallas_call over the first grid*block_n rows of `logits`."""
    grid, block_n = tgt2d.shape
    c = logits.shape[1]
    itemsize = jnp.dtype(logits.dtype).itemsize
    covered = grid * block_n

    kernel = functools.partial(_gce_kernel, q=q, weight_base=weight_base)
    cost = pl.CostEstimate(
        flops=6 * covered * c,
        transcendentals=covered * (c + 1),
        bytes_accessed=covered * c * itemsize + covered * 4 + 2 * covered * 4,
    )

    return pl.pallas_call(
        kernel,
        out_shape=jax.ShapeDtypeStruct((grid, 2, block_n), jnp.float32),
        grid_spec=pltpu.PrefetchScalarGridSpec(
            num_scalar_prefetch=0,
            grid=(grid,),
            in_specs=[
                pl.BlockSpec((block_n, c), lambda i: (i, 0)),   # logits tile (HBM-read bound)
                pl.BlockSpec((1, block_n), lambda i: (i, 0)),   # lane-dense targets row
            ],
            out_specs=pl.BlockSpec((1, 2, block_n), lambda i: (i, 0, 0)),
        ),
        compiler_params=pltpu.CompilerParams(
            dimension_semantics=("parallel",),       # megacore-sharded rows on v7x
            vmem_limit_bytes=_vmem_limit_bytes(),    # generation-aware limit
        ),
        cost_estimate=cost,
    )(logits, tgt2d)


def generalized_ce_loss(logits, targets, *, q=0.7, weight_base=0.0, block_n=None):
    """logits: [N, C] float (f32 or bf16), targets: [N] int.
    Returns (loss[N], weight[N]) in f32."""
    n, c = logits.shape
    itemsize = jnp.dtype(logits.dtype).itemsize
    if block_n is None:
        block_n = _pick_block_n(n, c, itemsize)
    else:
        block_n = int(max(8, min(block_n, n)))
        if block_n < n:
            block_n = max(8, (block_n // 8) * 8)

    q = float(q)
    weight_base = float(weight_base)
    tgt = targets.astype(jnp.int32)

    n_main = (n // block_n) * block_n
    r = n - n_main

    parts_loss, parts_w = [], []
    if n_main > 0:
        grid = n_main // block_n
        # Full (unsliced, unpadded) logits array; the grid only covers the
        # divisible prefix, so no extra HBM copy of the big input is made.
        out = _gce_call(logits, tgt[:n_main].reshape(grid, block_n),
                        q=q, weight_base=weight_base)
        parts_loss.append(out[:, 0, :].reshape(n_main))
        parts_w.append(out[:, 1, :].reshape(n_main))
    if r > 0:
        # Tail rows (< one tile) as a single full-dims block in a tiny second
        # call — avoids padding/copying the large logits array in HBM.
        out_t = _gce_call(logits[n_main:], tgt[n_main:].reshape(1, r),
                          q=q, weight_base=weight_base)
        parts_loss.append(out_t[:, 0, :].reshape(r))
        parts_w.append(out_t[:, 1, :].reshape(r))

    loss = parts_loss[0] if len(parts_loss) == 1 else jnp.concatenate(parts_loss)
    weight = parts_w[0] if len(parts_w) == 1 else jnp.concatenate(parts_w)
    return loss, weight


def _reference(logits, targets, q=0.7, weight_base=0.0):
    # Pure-JAX reference of the PyTorch forward.
    logp = jax.nn.log_softmax(logits.astype(jnp.float32), axis=1)
    p = jnp.exp(logp)
    yg = jnp.take_along_axis(p, targets[:, None], axis=1)[:, 0]
    w = yg ** q * q
    ce = -jnp.take_along_axis(logp, targets[:, None], axis=1)[:, 0]
    return ce * w + weight_base, w


if __name__ == "__main__":
    key = jax.random.PRNGKey(0)

    # Case 2 exercises multi-block + tail (260 = 2*128 + 4) and C < 128 with a
    # nonzero weight_base; case 3 exercises the bf16 (halved-HBM-bytes) path.
    cases = [
        (40, 128, 0.0, jnp.float32),
        (260, 64, 0.1, jnp.float32),
        (200, 256, 0.0, jnp.bfloat16),
    ]
    for (N, C, wb, dt) in cases:
        k1, k2, key = jax.random.split(key, 3)
        logits = (jax.random.normal(k1, (N, C), dtype=jnp.float32) * 3.0).astype(dt)
        targets = jax.random.randint(k2, (N,), 0, C, dtype=jnp.int32)

        loss, weight = generalized_ce_loss(logits, targets, q=0.7, weight_base=wb)
        jax.block_until_ready((loss, weight))

        ref_loss, ref_w = _reference(logits, targets, q=0.7, weight_base=wb)
        assert loss.shape == (N,) and weight.shape == (N,)
        assert jnp.allclose(loss, ref_loss, atol=1e-4, rtol=1e-4)
        assert jnp.allclose(weight, ref_w, atol=1e-4, rtol=1e-4)

    print("KERNEL_OK")
</pallas_src>

<mosaic_0001>
module attributes {stable_mosaic.version = 11 : i64} {
  func.func @_gce_kernel(%arg0: i32, %arg1: memref<40x128xf32, #tpu.memory_space<vmem>>, %arg2: memref<1x40xi32, #tpu.memory_space<vmem>>, %arg3: memref<1x2x40xf32, #tpu.memory_space<vmem>>) attributes {dimension_semantics = [#tpu.dimension_semantics<parallel>], iteration_bounds = array<i64: 1>, scalar_prefetch = 0 : i64, scratch_operands = 0 : i64, tpu.core_type = #tpu.core_type<tc>, window_params = [{transform_indices = @transform_0, window_bounds = array<i64: 40, 128>}, {transform_indices = @transform_1, window_bounds = array<i64: 1, 40>}, {transform_indices = @transform_2, window_bounds = array<i64: 1, 2, 40>}]} {
    %c0 = arith.constant 0 : index
    %c0_0 = arith.constant 0 : index
    %0 = vector.load %arg1[%c0, %c0_0] : memref<40x128xf32, #tpu.memory_space<vmem>>, vector<40x128xf32>
    %c0_1 = arith.constant 0 : index
    %c0_2 = arith.constant 0 : index
    %1 = vector.load %arg2[%c0_1, %c0_2] : memref<1x40xi32, #tpu.memory_space<vmem>>, vector<1x40xi32>
    %2 = tpu.transpose %1, [1, 0] : vector<1x40xi32> -> vector<40x1xi32>
    %cst = arith.constant dense<0xFF800000> : vector<40xf32>
    %3 = vector.multi_reduction <maximumf>, %0, %cst [1] : vector<40x128xf32> to vector<40xf32>
    %4 = vector.shape_cast %3 : vector<40xf32> to vector<40x1xf32>
    %5 = vector.broadcast %4 : vector<40x1xf32> to vector<40x128xf32>
    %6 = arith.subf %0, %5 : vector<40x128xf32>
    %7 = math.exp %6 : vector<40x128xf32>
    %cst_3 = arith.constant dense<0.000000e+00> : vector<40xf32>
    %8 = vector.multi_reduction <add>, %7, %cst_3 [1] : vector<40x128xf32> to vector<40xf32>
    %9 = vector.shape_cast %8 : vector<40xf32> to vector<40x1xf32>
    %10 = tpu.iota {dimensions = array<i32: 1>} : vector<40x128xi32>
    %11 = vector.broadcast %2 : vector<40x1xi32> to vector<40x128xi32>
    %12 = arith.cmpi eq, %10, %11 : vector<40x128xi32>
    %cst_4 = arith.constant 0.000000e+00 : f32
    %13 = vector.broadcast %cst_4 : f32 to vector<40x128xf32>
    %14 = arith.select %12, %0, %13 : vector<40x128xi1>, vector<40x128xf32>
    %cst_5 = arith.constant dense<0.000000e+00> : vector<40xf32>
    %15 = vector.multi_reduction <add>, %14, %cst_5 [1] : vector<40x128xf32> to vector<40xf32>
    %16 = vector.shape_cast %15 : vector<40xf32> to vector<40x1xf32>
    %17 = math.log %9 : vector<40x1xf32>
    %18 = arith.addf %17, %4 : vector<40x1xf32>
    %19 = arith.subf %18, %16 : vector<40x1xf32>
    %20 = tpu.transpose %19, [1, 0] : vector<40x1xf32> -> vector<1x40xf32>
    %cst_6 = arith.constant -0.699999988 : f32
    %21 = vector.broadcast %cst_6 : f32 to vector<1x40xf32>
    %22 = arith.mulf %21, %20 : vector<1x40xf32>
    %23 = math.exp %22 : vector<1x40xf32>
    %cst_7 = arith.constant 0.699999988 : f32
    %24 = vector.broadcast %cst_7 : f32 to vector<1x40xf32>
    %25 = arith.mulf %24, %23 : vector<1x40xf32>
    %26 = arith.mulf %20, %25 : vector<1x40xf32>
    %cst_8 = arith.constant 0.000000e+00 : f32
    %27 = vector.broadcast %cst_8 : f32 to vector<1x40xf32>
    %28 = arith.addf %26, %27 : vector<1x40xf32>
    %29 = tpu.concatenate %28, %25 in 0 : vector<1x40xf32>, vector<1x40xf32> -> vector<2x40xf32>
    %c0_9 = arith.constant 0 : index
    %c0_10 = arith.constant 0 : index
    %c0_11 = arith.constant 0 : index
    %30 = vector.load %arg3[%c0_9, %c0_10, %c0_11] : memref<1x2x40xf32, #tpu.memory_space<vmem>>, vector<1x2x40xf32>
    %31 = vector.shape_cast %30 : vector<1x2x40xf32> to vector<2x40xf32>
    %32 = vector.shape_cast %29 : vector<2x40xf32> to vector<1x2x40xf32>
    tpu.vector_store %arg3[%c0_9, %c0_10, %c0_11], %32 {strides = array<i32>} : memref<1x2x40xf32, #tpu.memory_space<vmem>>, vector<1x2x40xf32>,
    return
  }
  func.func @transform_0(%arg0: i32) -> (i32, i32) {
    %c0_i32 = arith.constant 0 : i32
    %c0_i32_0 = arith.constant 0 : i32
    return %arg0, %c0_i32 : i32, i32
  }
  func.func @transform_1(%arg0: i32) -> (i32, i32) {
    %c0_i32 = arith.constant 0 : i32
    %c0_i32_0 = arith.constant 0 : i32
    return %arg0, %c0_i32 : i32, i32
  }
  func.func @transform_2(%arg0: i32) -> (i32, i32, i32) {
    %c0_i32 = arith.constant 0 : i32
    %c0_i32_0 = arith.constant 0 : i32
    %c0_i32_1 = arith.constant 0 : i32
    return %arg0, %c0_i32, %c0_i32_0 : i32, i32, i32
  }
}

</mosaic_0001>

<llo_original>
// kernel: tpu_custom_call.1
$region0: #{tpu_custom_call.1}
  #allocation0 [shape = 'u32[]', space=smem, size = 0x4, offset = 0x4, fixed_abs, tag = 'smem constant byte address 0x4 - core index']
  #allocation1 [shape = 'u32[72,128]{1,0:T(1,128)}', space=vmem, size = 0x9000, scoped, tag = 'internal scratch']
  %s0 = inlined_call_operand.hbm [shape: f32[40,128], index: 0, kind: input, shape index: {}]
  %s1 = inlined_call_operand.hbm [shape: s32[1,40], index: 1, kind: input, shape index: {}]
  %s2 = inlined_call_operand.hbm [shape: f32[1,2,40], index: 2, kind: output, shape index: {}]
  %s3 = sld [smem:[#allocation0]]
  $region26: #{tpu_custom_call.1} parent=0
    _
  %s5 = ssub.s32 1, %s3
  %s6 = scalar_select 0, %s5, %s3
  $region1: #{tpu_custom_call.1} parent=0
    #allocation2 [shape = 'u8[20480]{0}', space=vmem, size = 0x5000, scoped, tag = 'input window, operand 0, single buffered']
    #allocation3 [shape = 's32[1]{0}', space=sflag, size = 0x4, scoped, tag = 'scoped memory for tpu_custom_call.1']
    #allocation4 [shape = 's32[1]{0}', space=sflag, size = 0x4, scoped, tag = 'scoped memory for tpu_custom_call.1']
    #allocation5 [shape = 'u8[512]{0}', space=vmem, size = 0x400, scoped, tag = 'input window, operand 1, single buffered']
    #allocation6 [shape = 's32[1]{0}', space=sflag, size = 0x4, scoped, tag = 'scoped memory for tpu_custom_call.1']
    #allocation7 [shape = 'u8[1024]{0}', space=vmem, size = 0x400, scoped, tag = 'output window, operand 0, single buffered']
    %7 = vsyncpa [#allocation3], 0
    %8 = vsyncpa [#allocation6], 0
    %9 = vsyncpa [#allocation4], 0
    // Predicated region
    $region2: #{tpu_custom_call.1} parent=1 // pred_check
      _
    $region3: #{tpu_custom_call.1} parent=1 // pred_check_branch
      %11 = sbr.rel (0) target = $region5
    $region4: #{tpu_custom_call.1} parent=1 // pred_region
      %13 = vsyncadd [#allocation3], 0
      %s14 = sshll.u32 %s0, 4
      %s15 = int_to_ptr.hbm [resolvable:$true] %s14
      %s16 = sshll.u32 [#allocation2], 4
      %s17 = int_to_ptr.vmem [resolvable:$true] %s16
      %22 = dma.hbm_to_vmem [thread:$0]  %s15, 640, %s17, [#allocation3], 128, 128, 8
    $region5: #{tpu_custom_call.1} parent=1 // pred_fallthru
      _
    // Predicated region
    $region6: #{tpu_custom_call.1} parent=1 // pred_check
      _
    $region7: #{tpu_custom_call.1} parent=1 // pred_check_branch
      %24 = sbr.rel (0) target = $region9
    $region8: #{tpu_custom_call.1} parent=1 // pred_region
      %26 = vsyncadd [#allocation6], 0
      %s28 = sshll.u32 %s1, 4
      %s29 = int_to_ptr.hbm [resolvable:$true] %s28
      %s30 = sshll.u32 [#allocation5], 4
      %s31 = int_to_ptr.vmem [resolvable:$true] %s30
      %33 = dma.hbm_to_vmem [thread:$0]  %s29, 16, %s31, [#allocation6]
    $region9: #{tpu_custom_call.1} parent=1 // pred_fallthru
      _
    // Predicated region
    $region10: #{tpu_custom_call.1} parent=1 // pred_check
      _
    $region11: #{tpu_custom_call.1} parent=1 // pred_check_branch
      %35 = sbr.rel (0) target = $region13
    $region12: #{tpu_custom_call.1} parent=1 // pred_region
      %37 = dma.done [#allocation3], 640
    $region13: #{tpu_custom_call.1} parent=1 // pred_fallthru
      _
    // Predicated region
    $region14: #{tpu_custom_call.1} parent=1 // pred_check
      _
    $region15: #{tpu_custom_call.1} parent=1 // pred_check_branch
      %39 = sbr.rel (0) target = $region17
    $region16: #{tpu_custom_call.1} parent=1 // pred_region
      %41 = dma.done [#allocation6], 16
    $region17: #{tpu_custom_call.1} parent=1 // pred_fallthru
      _
    %v42 = vld [vmem:[#allocation2] sm:$0xff]
    %v43 = vld [vmem:[#allocation2 + $0x8] sm:$0xff]
    %v44 = vld [vmem:[#allocation2 + $0x10] sm:$0xff]
    %v45 = vld [vmem:[#allocation2 + $0x18] sm:$0xff]
    %v46 = vld [vmem:[#allocation2 + $0x20] sm:$0xff]
    %v47 = vld [vmem:[#allocation5] sm:$0x1]
    %48 = vxpose.xlu0.b32.start [1/16] %v47, 128
    %49 = vxpose.xlu0.b32.cont [2/16] 0, 128
    %50 = vxpose.xlu0.b32.cont [3/16] 0, 128
    %51 = vxpose.xlu0.b32.cont [4/16] 0, 128
    %52 = vxpose.xlu0.b32.cont [5/16] 0, 128
    %53 = vxpose.xlu0.b32.cont [6/16] 0, 128
    %54 = vxpose.xlu0.b32.cont [7/16] 0, 128
    %55 = vxpose.xlu0.b32.cont [8/16] 0, 128
    %56 = vxpose.xlu0.b32.cont [9/16] 0, 128
    %57 = vxpose.xlu0.b32.cont [10/16] 0, 128
    %58 = vxpose.xlu0.b32.cont [11/16] 0, 128
    %59 = vxpose.xlu0.b32.cont [12/16] 0, 128
    %60 = vxpose.xlu0.b32.cont [13/16] 0, 128
    %61 = vxpose.xlu0.b32.cont [14/16] 0, 128
    %62 = vxpose.xlu0.b32.cont [15/16] 0, 128
    %63 = vxpose.xlu0.b32.end [16/16] 0, 128
    %v64 = vpop.trf.xlu0
    %v65 = vpop.trf.xlu0
    %v66 = vpop.trf.xlu0
    %v67 = vpop.trf.xlu0
    %v68 = vpop.trf.xlu0
    %v69 = vpop.trf.xlu0
    %v70 = vpop.trf.xlu0
    %v71 = vpop.trf.xlu0
    %v72 = vpop.trf.xlu0
    %v73 = vpop.trf.xlu0
    %v74 = vpop.trf.xlu0
    %v75 = vpop.trf.xlu0
    %v76 = vpop.trf.xlu0
    %v77 = vpop.trf.xlu0
    %v78 = vpop.trf.xlu0
    %v79 = vpop.trf.xlu0
    %80 = vmax.xlane.f32.xlu0 %v42
    %v81 = vpop.xlane.xlu0 %80
    %82 = vmax.xlane.f32.xlu0 %v43
    %v83 = vpop.xlane.xlu0 %82
    %84 = vmax.xlane.f32.xlu0 %v44
    %v85 = vpop.xlane.xlu0 %84
    %86 = vmax.xlane.f32.xlu0 %v45
    %v87 = vpop.xlane.xlu0 %86
    %88 = vmax.xlane.f32.xlu0 %v46
    %v89 = vpop.xlane.xlu0 %88
    %v90 = vsub.f32 %v42, %v81
    %v91 = vsub.f32 %v43, %v83
    %v92 = vsub.f32 %v44, %v85
    %v93 = vsub.f32 %v45, %v87
    %v94 = vsub.f32 %v46, %v89
    %v95 = vmul.f32 %v90, 1.442695
    %v96 = vpow.pop %v95
    %v97 = vmul.f32 %v91, 1.442695
    %v98 = vpow.pop %v97
    %v99 = vmul.f32 %v92, 1.442695
    %v100 = vpow.pop %v99
    %v101 = vmul.f32 %v93, 1.442695
    %v102 = vpow.pop %v101
    %v103 = vmul.f32 %v94, 1.442695
    %v104 = vpow.pop %v103
    %105 = vadd.xlane.f32.xlu0 %v96
    %v106 = vpop.xlane.xlu0 %105
    %107 = vadd.xlane.f32.xlu0 %v98
    %v108 = vpop.xlane.xlu0 %107
    %109 = vadd.xlane.f32.xlu0 %v100
    %v110 = vpop.xlane.xlu0 %109
    %111 = vadd.xlane.f32.xlu0 %v102
    %v112 = vpop.xlane.xlu0 %111
    %113 = vadd.xlane.f32.xlu0 %v104
    %v114 = vpop.xlane.xlu0 %113
    %v115 = vlaneseq
    %v116 = vand.u32 %v115, 127
    %117 = vset.pattern.permute.xlu0 0
    %118 = vperm.xlu0 %117, %v64
    %v119 = vpop.permute.xlu0 %118
    %120 = vset.pattern.permute.xlu0 0
    %121 = vperm.xlu0 %120, %v65
    %v122 = vpop.permute.xlu0 %121
    %123 = vset.pattern.permute.xlu0 0
    %124 = vperm.xlu0 %123, %v66
    %v125 = vpop.permute.xlu0 %124
    %126 = vset.pattern.permute.xlu0 0
    %127 = vperm.xlu0 %126, %v67
    %v128 = vpop.permute.xlu0 %127
    %129 = vset.pattern.permute.xlu0 0
    %130 = vperm.xlu0 %129, %v68
    %v131 = vpop.permute.xlu0 %130
    %vm132 = vcmp.eq.s32.totalorder %v116, %v119
    %vm133 = vcmp.eq.s32.totalorder %v116, %v122
    %vm134 = vcmp.eq.s32.totalorder %v116, %v125
    %vm135 = vcmp.eq.s32.totalorder %v116, %v128
    %vm136 = vcmp.eq.s32.totalorder %v116, %v131
    %v137 = vsel %vm132, %v42, 0.0
    %v138 = vsel %vm133, %v43, 0.0
    %v139 = vsel %vm134, %v44, 0.0
    %v140 = vsel %vm135, %v45, 0.0
    %v141 = vsel %vm136, %v46, 0.0
    %142 = vadd.xlane.f32.xlu0 %v137
    %v143 = vpop.xlane.xlu0 %142
    %144 = vadd.xlane.f32.xlu0 %v138
    %v145 = vpop.xlane.xlu0 %144
    %146 = vadd.xlane.f32.xlu0 %v139
    %v147 = vpop.xlane.xlu0 %146
    %148 = vadd.xlane.f32.xlu0 %v140
    %v149 = vpop.xlane.xlu0 %148
    %150 = vadd.xlane.f32.xlu0 %v141
    %v151 = vpop.xlane.xlu0 %150
    %v152 = vlog2.pop %v106
    %v153 = vmul.f32 %v152, 0.6931472
    %v154 = vlog2.pop %v108
    %v155 = vmul.f32 %v154, 0.6931472
    %v156 = vlog2.pop %v110
    %v157 = vmul.f32 %v156, 0.6931472
    %v158 = vlog2.pop %v112
    %v159 = vmul.f32 %v158, 0.6931472
    %v160 = vlog2.pop %v114
    %v161 = vmul.f32 %v160, 0.6931472
    %v162 = vadd.f32 %v153, %v81
    %v163 = vadd.f32 %v155, %v83
    %v164 = vadd.f32 %v157, %v85
    %v165 = vadd.f32 %v159, %v87
    %v166 = vadd.f32 %v161, %v89
    %v167 = vsub.f32 %v162, %v143
    %v168 = vsub.f32 %v163, %v145
    %v169 = vsub.f32 %v164, %v147
    %v170 = vsub.f32 %v165, %v149
    %v171 = vsub.f32 %v166, %v151
    %172 = vxpose.xlu0.b32.start [1/16] %v167, 128
    %173 = vxpose.xlu0.b32.cont [2/16] %v168, 128
    %174 = vxpose.xlu0.b32.cont [3/16] %v169, 128
    %175 = vxpose.xlu0.b32.cont [4/16] %v170, 128
    %176 = vxpose.xlu0.b32.cont [5/16] %v171, 128
    %177 = vxpose.xlu0.b32.cont [6/16] 0.0, 128
    %178 = vxpose.xlu0.b32.cont [7/16] 0.0, 128
    %179 = vxpose.xlu0.b32.cont [8/16] 0.0, 128
    %180 = vxpose.xlu0.b32.cont [9/16] 0.0, 128
    %181 = vxpose.xlu0.b32.cont [10/16] 0.0, 128
    %182 = vxpose.xlu0.b32.cont [11/16] 0.0, 128
    %183 = vxpose.xlu0.b32.cont [12/16] 0.0, 128
    %184 = vxpose.xlu0.b32.cont [13/16] 0.0, 128
    %185 = vxpose.xlu0.b32.cont [14/16] 0.0, 128
    %186 = vxpose.xlu0.b32.cont [15/16] 0.0, 128
    %187 = vxpose.xlu0.b32.end [16/16] 0.0, 128
    %v188 = vpop.trf.xlu0
    %v189 = vpop.trf.xlu0
    %v190 = vpop.trf.xlu0
    %v191 = vpop.trf.xlu0
    %v192 = vpop.trf.xlu0
    %v193 = vpop.trf.xlu0
    %v194 = vpop.trf.xlu0
    %v195 = vpop.trf.xlu0
    %v196 = vpop.trf.xlu0
    %v197 = vpop.trf.xlu0
    %v198 = vpop.trf.xlu0
    %v199 = vpop.trf.xlu0
    %v200 = vpop.trf.xlu0
    %v201 = vpop.trf.xlu0
    %v202 = vpop.trf.xlu0
    %v203 = vpop.trf.xlu0
    %v204 = vmul.f32 %v188, -0.7
    %v205 = vmul.f32 %v204, 1.442695
    %v206 = vpow.pop %v205
    %v207 = vmul.f32 %v206, 0.7
    %v208 = vmul.f32 %v188, %v207
    %v209 = vadd.f32 %v208, 0.0
    %v211 = vrot.slane %v207, 7
    %vm213 = vcmask 1040384
    %v214 = vsel %vm213, %v209, %v211
    %vm215 = vcmask 320512
    %216 = vst.msk [vmem:[#allocation7] sm:$0x3] %vm215, %v214
    // Predicated region
    $region18: #{tpu_custom_call.1} parent=1 // pred_check
      _
    $region19: #{tpu_custom_call.1} parent=1 // pred_check_branch
      %218 = sbr.rel (0) target = $region21
    $region20: #{tpu_custom_call.1} parent=1 // pred_region
      %220 = vsyncadd [#allocation4], 0
      %s222 = sshll.u32 [#allocation7], 4
      %s223 = int_to_ptr.vmem [resolvable:$true] %s222
      %s224 = sshll.u32 %s2, 4
      %s225 = int_to_ptr.hbm [resolvable:$true] %s224
      %227 = dma.vmem_to_hbm [thread:$0]  %s223, 32, %s225, [#allocation4]
    $region21: #{tpu_custom_call.1} parent=1 // pred_fallthru
      _
    // Predicated region
    $region22: #{tpu_custom_call.1} parent=1 // pred_check
      _
    $region23: #{tpu_custom_call.1} parent=1 // pred_check_branch
      %229 = sbr.rel (0) target = $region25
    $region24: #{tpu_custom_call.1} parent=1 // pred_region
      %231 = dma.done [#allocation4], 32
    $region25: #{tpu_custom_call.1} parent=1 // pred_fallthru
      _
    %232 = vsyncpa [#allocation3], 1
    %233 = vsyncpa [#allocation6], 1
    %234 = vsyncpa [#allocation4], 1

</llo_original>
